<compile_context>
chip_gen: v7x
topology: tpu7x:2x2x1
jax: 0.10.0
libtpu: 0.0.40
codegen_flags: <defaults>
</compile_context>

<pallas_src>
import functools

import jax
import jax.numpy as jnp
from jax.experimental import pallas as pl
from jax.experimental.pallas import tpu as pltpu


def _conv2d_kernel(x_ref, w_ref, b_ref, o_ref, *, KH, KW, W):
    """Valid (no-pad, stride-1) 2D conv, one image per grid step.

    Perf-review driven v2:
      * ONE fused MXU matmul per image: (Cout, KH*KW*Cin) x (KH*KW*Cin, L)
        instead of KH*KW tiny K=Cin dots + a VALU accumulation chain,
      * the activation plane is loaded from VMEM exactly once per image; the
        KH*KW shifted taps come from pltpu.roll (XLU slot) instead of
        lane-misaligned ref slices (repeated vld traffic + rotates),
      * weights are a single (Cout, KH*KW*Cin) tile (one padded vreg tile, one
        load) instead of a (KH*KW, Cout, Cin) stack of 9 padded tiles,
      * output lane dim L is a multiple of 128 -> unmasked full-vreg stores;
        the (jitted) wrapper slices the wide rows / pad tail off,
      * grid=(N,) with dimension_semantics=('parallel',): images shard across
        TensorCores on v7x and get DMA double-buffering as N grows,
      * bias added once to the final f32 accumulator.

    x_ref: (1, Cin, L)          L = round_up(H*W, 128), zero-padded tail
    w_ref: (Cout, KH*KW*Cin)    column (kh*KW + kw)*Cin + cin   (OIHW -> O(HWI))
    b_ref: (Cout, 1)
    o_ref: (1, Cout, L)         "wide" rows; wrapper keeps [:, :, :Hout*W] and
                                then drops the KW-1 garbage columns per row.
    """
    L = x_ref.shape[2]
    plane = x_ref[0]                                    # (Cin, L), single load
    taps = []
    for kh in range(KH):
        for kw in range(KW):
            s = kh * W + kw                             # flat spatial shift
            # rolled[:, i] == plane[:, (i + s) % L]; wrapped lanes only land in
            # output columns that the wrapper discards.
            taps.append(plane if s == 0
                        else pltpu.roll(plane, shift=L - s, axis=1))
    lhs = jnp.concatenate(taps, axis=0)                 # (KH*KW*Cin, L) im2col
    acc = jnp.dot(w_ref[...], lhs,                      # one MXU matmul
                  preferred_element_type=jnp.float32)   # (Cout, L)
    o_ref[0] = (acc + b_ref[...]).astype(o_ref.dtype)   # lane-dense store


@jax.jit
def conv2d_pallas(x_nchw, w_oihw, bias):
    """nn.Conv2d(ch_in, ch_out, (KH, KW)) forward: valid conv, stride 1, bias."""
    # TODO(synk): hard-assumes stride=1, dilation=1, no input padding (matches
    # the reference module's default Conv2d config).
    N, Cin, H, W = x_nchw.shape
    Cout, Cin_w, KH, KW = w_oihw.shape
    assert Cin == Cin_w
    Hout, Wout = H - KH + 1, W - KW + 1

    HW = H * W
    L = ((HW + 127) // 128) * 128          # lane-dense, 128-aligned plane size

    # Cheap (and now jit-fused) wrapper prep: flatten + pad activations (no
    # NCHW<->NHWC transpose), one (Cout, KH*KW*Cin) weight matrix, column bias.
    x_flat = x_nchw.reshape(N, Cin, HW)
    if L != HW:
        x_flat = jnp.pad(x_flat, ((0, 0), (0, 0), (0, L - HW)))
    w_mat = jnp.transpose(w_oihw, (0, 2, 3, 1)).reshape(Cout, KH * KW * Cin)
    b_col = bias.reshape(Cout, 1)

    kernel = functools.partial(_conv2d_kernel, KH=KH, KW=KW, W=W)

    out_wide = pl.pallas_call(
        kernel,
        out_shape=jax.ShapeDtypeStruct((N, Cout, L), x_nchw.dtype),
        grid_spec=pltpu.PrefetchScalarGridSpec(
            num_scalar_prefetch=0,
            grid=(N,),                                      # one image per step
            in_specs=[
                pl.BlockSpec((1, Cin, L), lambda n: (n, 0, 0)),
                pl.BlockSpec((Cout, KH * KW * Cin), lambda n: (0, 0)),
                pl.BlockSpec((Cout, 1), lambda n: (0, 0)),
            ],
            out_specs=pl.BlockSpec((1, Cout, L), lambda n: (n, 0, 0)),
        ),
        compiler_params=pltpu.CompilerParams(
            dimension_semantics=("parallel",)),             # 2 TCs on v7x
    )(x_flat, w_mat, b_col)

    # Keep the Hout*W wide rows, then drop the KW-1 garbage columns per row.
    return out_wide[:, :, :Hout * W].reshape(N, Cout, Hout, W)[:, :, :, :Wout]


if __name__ == "__main__":
    # Module config: Conv2d(ch_in=4, ch_out=8, kernel=(3, 3))
    N, Cin, H, W = 2, 4, 16, 16
    Cout, KH, KW = 8, 3, 3

    key = jax.random.PRNGKey(0)
    kx, kw, kb = jax.random.split(key, 3)

    x = jax.random.normal(kx, (N, Cin, H, W), dtype=jnp.float32)

    # Deterministic param init mirroring PyTorch Conv2d default U(-sqrt(k), sqrt(k)).
    fan_in = Cin * KH * KW
    bound = 1.0 / (fan_in ** 0.5)
    weight = jax.random.uniform(kw, (Cout, Cin, KH, KW), jnp.float32,
                                minval=-bound, maxval=bound)
    bias = jax.random.uniform(kb, (Cout,), jnp.float32,
                              minval=-bound, maxval=bound)

    out = conv2d_pallas(x, weight, bias)
    out = jax.block_until_ready(out)

    # Reference check against XLA's conv (NCHW / OIHW, valid padding).
    ref = jax.lax.conv_general_dilated(
        x, weight, window_strides=(1, 1), padding="VALID",
        dimension_numbers=("NCHW", "OIHW", "NCHW"))
    ref = ref + bias[None, :, None, None]

    assert out.shape == (N, Cout, H - KH + 1, W - KW + 1)
    assert jnp.allclose(out, ref, atol=1e-4, rtol=1e-4)
    print("KERNEL_OK")
</pallas_src>

<mosaic_0001>
module attributes {stable_mosaic.version = 11 : i64} {
  func.func @_conv2d_kernel(%arg0: i32, %arg1: memref<1x4x256xf32, #tpu.memory_space<vmem>>, %arg2: memref<8x36xf32, #tpu.memory_space<vmem>>, %arg3: memref<8x1xf32, #tpu.memory_space<vmem>>, %arg4: memref<1x8x256xf32, #tpu.memory_space<vmem>>) attributes {dimension_semantics = [#tpu.dimension_semantics<parallel>], iteration_bounds = array<i64: 2>, scalar_prefetch = 0 : i64, scratch_operands = 0 : i64, tpu.core_type = #tpu.core_type<tc>, window_params = [{transform_indices = @transform_0, window_bounds = array<i64: 1, 4, 256>}, {pipeline_mode = #tpu.pipeline_mode<synchronous>, transform_indices = @transform_1, window_bounds = array<i64: 8, 36>}, {pipeline_mode = #tpu.pipeline_mode<synchronous>, transform_indices = @transform_2, window_bounds = array<i64: 8, 1>}, {transform_indices = @transform_3, window_bounds = array<i64: 1, 8, 256>}]} {
    %c0 = arith.constant 0 : index
    %c0_0 = arith.constant 0 : index
    %c0_1 = arith.constant 0 : index
    %0 = vector.load %arg1[%c0, %c0_0, %c0_1] : memref<1x4x256xf32, #tpu.memory_space<vmem>>, vector<1x4x256xf32>
    %1 = vector.shape_cast %0 : vector<1x4x256xf32> to vector<4x256xf32>
    %c255_i32 = arith.constant 255 : i32
    %2 = tpu.dynamic_rotate %1 by %c255_i32 dim 1 : vector<4x256xf32>, i32 -> vector<4x256xf32>
    %c254_i32 = arith.constant 254 : i32
    %3 = tpu.dynamic_rotate %1 by %c254_i32 dim 1 : vector<4x256xf32>, i32 -> vector<4x256xf32>
    %c240_i32 = arith.constant 240 : i32
    %4 = tpu.dynamic_rotate %1 by %c240_i32 dim 1 : vector<4x256xf32>, i32 -> vector<4x256xf32>
    %c239_i32 = arith.constant 239 : i32
    %5 = tpu.dynamic_rotate %1 by %c239_i32 dim 1 : vector<4x256xf32>, i32 -> vector<4x256xf32>
    %c238_i32 = arith.constant 238 : i32
    %6 = tpu.dynamic_rotate %1 by %c238_i32 dim 1 : vector<4x256xf32>, i32 -> vector<4x256xf32>
    %c224_i32 = arith.constant 224 : i32
    %7 = tpu.dynamic_rotate %1 by %c224_i32 dim 1 : vector<4x256xf32>, i32 -> vector<4x256xf32>
    %c223_i32 = arith.constant 223 : i32
    %8 = tpu.dynamic_rotate %1 by %c223_i32 dim 1 : vector<4x256xf32>, i32 -> vector<4x256xf32>
    %c222_i32 = arith.constant 222 : i32
    %9 = tpu.dynamic_rotate %1 by %c222_i32 dim 1 : vector<4x256xf32>, i32 -> vector<4x256xf32>
    %10 = tpu.concatenate %1, %2, %3, %4, %5, %6, %7, %8, %9 in 0 : vector<4x256xf32>, vector<4x256xf32>, vector<4x256xf32>, vector<4x256xf32>, vector<4x256xf32>, vector<4x256xf32>, vector<4x256xf32>, vector<4x256xf32>, vector<4x256xf32> -> vector<36x256xf32>
    %c0_2 = arith.constant 0 : index
    %c0_3 = arith.constant 0 : index
    %11 = vector.load %arg2[%c0_2, %c0_3] : memref<8x36xf32, #tpu.memory_space<vmem>>, vector<8x36xf32>
    %cst = arith.constant dense<0.000000e+00> : vector<8x256xf32>
    %12 = tpu.matmul %11, %10, %cst {dimension_numbers = #tpu.dot_dimension_numbers<[1], [0], [0], [1], [0, 0, 1, 1], [], []>} : vector<8x36xf32>, vector<36x256xf32>, vector<8x256xf32> -> vector<8x256xf32>
    %c0_4 = arith.constant 0 : index
    %c0_5 = arith.constant 0 : index
    %13 = vector.load %arg3[%c0_4, %c0_5] : memref<8x1xf32, #tpu.memory_space<vmem>>, vector<8x1xf32>
    %14 = vector.broadcast %13 : vector<8x1xf32> to vector<8x256xf32>
    %15 = arith.addf %12, %14 : vector<8x256xf32>
    %c0_6 = arith.constant 0 : index
    %c0_7 = arith.constant 0 : index
    %c0_8 = arith.constant 0 : index
    %16 = vector.load %arg4[%c0_6, %c0_7, %c0_8] : memref<1x8x256xf32, #tpu.memory_space<vmem>>, vector<1x8x256xf32>
    %17 = vector.shape_cast %16 : vector<1x8x256xf32> to vector<8x256xf32>
    %18 = vector.shape_cast %15 : vector<8x256xf32> to vector<1x8x256xf32>
    tpu.vector_store %arg4[%c0_6, %c0_7, %c0_8], %18 {strides = array<i32>} : memref<1x8x256xf32, #tpu.memory_space<vmem>>, vector<1x8x256xf32>,
    return
  }
  func.func @transform_0(%arg0: i32) -> (i32, i32, i32) {
    %c0_i32 = arith.constant 0 : i32
    %c0_i32_0 = arith.constant 0 : i32
    %c0_i32_1 = arith.constant 0 : i32
    return %arg0, %c0_i32, %c0_i32_0 : i32, i32, i32
  }
  func.func @transform_1(%arg0: i32) -> (i32, i32) {
    %c0_i32 = arith.constant 0 : i32
    %c0_i32_0 = arith.constant 0 : i32
    %c0_i32_1 = arith.constant 0 : i32
    return %c0_i32, %c0_i32_0 : i32, i32
  }
  func.func @transform_2(%arg0: i32) -> (i32, i32) {
    %c0_i32 = arith.constant 0 : i32
    %c0_i32_0 = arith.constant 0 : i32
    %c0_i32_1 = arith.constant 0 : i32
    return %c0_i32, %c0_i32_0 : i32, i32
  }
  func.func @transform_3(%arg0: i32) -> (i32, i32, i32) {
    %c0_i32 = arith.constant 0 : i32
    %c0_i32_0 = arith.constant 0 : i32
    %c0_i32_1 = arith.constant 0 : i32
    return %arg0, %c0_i32, %c0_i32_0 : i32, i32, i32
  }
}

</mosaic_0001>

<llo_original>
// kernel: conv2d_pallas.1
$region0: #{conv2d_pallas.1}
  #allocation0 [shape = 'u32[]', space=smem, size = 0x4, offset = 0x4, fixed_abs, tag = 'smem constant byte address 0x4 - core index']
  #allocation1 [shape = 'u32[144,128]{1,0:T(1,128)}', space=vmem, size = 0x12000, scoped, tag = 'internal scratch']
  %s0 = inlined_call_operand.vmem [shape: f32[2,4,256], index: 0, kind: input, shape index: {}]
  %s1 = inlined_call_operand.vmem [shape: f32[8,36], index: 1, kind: input, shape index: {}]
  %s2 = inlined_call_operand.vmem [shape: f32[8,1], index: 2, kind: input, shape index: {}]
  %s3 = inlined_call_operand.vmem [shape: f32[2,8,256], index: 3, kind: output, shape index: {}]
  %s4 = sld [smem:[#allocation0]]
  $region45: #{conv2d_pallas.1} parent=0
    _
  %s6 = ssub.s32 1, %s4
  %s7 = scalar_select 0, %s6, %s4
  loop: start=0, step=1, limit=4
  $region2: #{conv2d_pallas.1} parent=0 // loop_pre_header
    _
  $region3: #{conv2d_pallas.1} parent=0 // loop_header
    %s9 = sphi 0, %s13
    %p10 = scmp.ge.s32.totalorder %s9, 4
    %s19 = sphi 0, %s21
    %s22 = sphi 0, %s19
    %s23 = sphi 0, %s22
    %s39 = sphi 0, %s23
    %s43 = sphi 0, %s43
    %s45 = sphi 0, %s43
    %s46 = sphi 0, %s45
    %s60 = sphi 0, %s46
    %s64 = sphi 0, %s64
    %s66 = sphi 0, %s64
    %s67 = sphi 0, %s66
    %s81 = sphi 0, %s67
    %s87 = sphi 0, %s89
    %s90 = sphi 0, %s87
    %s91 = sphi 0, %s90
    %s107 = sphi 0, %s91
  $region4: #{conv2d_pallas.1} parent=0 // loop_header_branch
    %12 = sbr.rel (%p10) target = $region8
  $region5: #{conv2d_pallas.1} parent=0 // loop_body
    %s14 = ssub.s32 %s9, 1
    %s15 = ssub.s32 %s9, 2
    %s16 = sadd.s32 %s9, 1
    %s17 = ssub.s32 %s9, %s16
    %p18 = scmp.eq.s32.totalorder %s17, 0
    %s20 = sadd.s32 %s19, 1
    %s21 = scalar_select %p18, %s19, %s20
    %p24 = pneg %p18
    %p25 = scmp.eq.s32.totalorder %s9, 1
    %p26 = por %p24, %p25
    %p27 = scmp.ne.s32.totalorder %s19, %s22
    %p28 = scmp.eq.s32.totalorder %s9, 0
    %p29 = por %p27, %p28
    %p30 = scmp.ne.s32.totalorder %s19, %s22
    %p31 = scmp.eq.s32.totalorder %s14, 1
    %p32 = por %p30, %p31
    %p33 = scmp.ne.s32.totalorder %s22, %s23
    %p34 = scmp.eq.s32.totalorder %s14, 0
    %p35 = por %p33, %p34
    %p36 = scmp.ne.s32.totalorder %s22, %s23
    %p37 = scmp.eq.s32.totalorder %s15, 1
    %p38 = por %p36, %p37
    %p40 = scmp.ne.s32.totalorder %s23, %s39
    %p41 = scmp.eq.s32.totalorder %s15, 0
    %p42 = por %p40, %p41
    %s44 = sadd.s32 %s43, 1
    %p47 = scmp.eq.s32.totalorder %s9, 1
    %p48 = scmp.ne.s32.totalorder %s43, %s45
    %p49 = scmp.eq.s32.totalorder %s9, 0
    %p50 = por %p48, %p49
    %p51 = scmp.ne.s32.totalorder %s43, %s45
    %p52 = scmp.eq.s32.totalorder %s14, 1
    %p53 = por %p51, %p52
    %p54 = scmp.ne.s32.totalorder %s45, %s46
    %p55 = scmp.eq.s32.totalorder %s14, 0
    %p56 = por %p54, %p55
    %p57 = scmp.ne.s32.totalorder %s45, %s46
    %p58 = scmp.eq.s32.totalorder %s15, 1
    %p59 = por %p57, %p58
    %p61 = scmp.ne.s32.totalorder %s46, %s60
    %p62 = scmp.eq.s32.totalorder %s15, 0
    %p63 = por %p61, %p62
    %s65 = sadd.s32 %s64, 1
    %p68 = scmp.eq.s32.totalorder %s9, 1
    %p69 = scmp.ne.s32.totalorder %s64, %s66
    %p70 = scmp.eq.s32.totalorder %s9, 0
    %p71 = por %p69, %p70
    %p72 = scmp.ne.s32.totalorder %s64, %s66
    %p73 = scmp.eq.s32.totalorder %s14, 1
    %p74 = por %p72, %p73
    %p75 = scmp.ne.s32.totalorder %s66, %s67
    %p76 = scmp.eq.s32.totalorder %s14, 0
    %p77 = por %p75, %p76
    %p78 = scmp.ne.s32.totalorder %s66, %s67
    %p79 = scmp.eq.s32.totalorder %s15, 1
    %p80 = por %p78, %p79
    %p82 = scmp.ne.s32.totalorder %s67, %s81
    %p83 = scmp.eq.s32.totalorder %s15, 0
    %p84 = por %p82, %p83
    %s85 = ssub.s32 %s9, %s16
    %p86 = scmp.eq.s32.totalorder %s85, 0
    %s88 = sadd.s32 %s87, 1
    %s89 = scalar_select %p86, %s87, %s88
    %p92 = pneg %p86
    %p93 = scmp.eq.s32.totalorder %s9, 1
    %p94 = por %p92, %p93
    %p95 = scmp.ne.s32.totalorder %s87, %s90
    %p96 = scmp.eq.s32.totalorder %s9, 0
    %p97 = por %p95, %p96
    %p98 = scmp.ne.s32.totalorder %s87, %s90
    %p99 = scmp.eq.s32.totalorder %s14, 1
    %p100 = por %p98, %p99
    %p101 = scmp.ne.s32.totalorder %s90, %s91
    %p102 = scmp.eq.s32.totalorder %s14, 0
    %p103 = por %p101, %p102
    %p104 = scmp.ne.s32.totalorder %s90, %s91
    %p105 = scmp.eq.s32.totalorder %s15, 1
    %p106 = por %p104, %p105
    %p108 = scmp.ne.s32.totalorder %s91, %s107
    %p109 = scmp.eq.s32.totalorder %s15, 0
    %p110 = por %p108, %p109
    %p111 = scmp.le.s32.totalorder 1, %s9
    %p112 = scmp.lt.s32.totalorder %s9, 3
    %p113 = pnand %p111, %p112
    %p114 = pneg %p113
    // Predicated region
    $region9: #{conv2d_pallas.1} parent=5 // pred_check
      _
    $region10: #{conv2d_pallas.1} parent=5 // pred_check_branch
      %116 = sbr.rel (%p113) target = $region12
    $region11: #{conv2d_pallas.1} parent=5 // pred_region
      %s117 = ssub.s32 %s9, 1
      // Predicated region
      $region13: #{conv2d_pallas.1} parent=11 // pred_check
        %p118 = pneg %p56
      $region14: #{conv2d_pallas.1} parent=11 // pred_check_branch
        %120 = sbr.rel (%p118) target = $region16
      $region15: #{conv2d_pallas.1} parent=11 // pred_region
        _
      $region16: #{conv2d_pallas.1} parent=11 // pred_fallthru
        _
      // Predicated region
      $region17: #{conv2d_pallas.1} parent=11 // pred_check
        %p121 = pneg %p77
      $region18: #{conv2d_pallas.1} parent=11 // pred_check_branch
        %123 = sbr.rel (%p121) target = $region20
      $region19: #{conv2d_pallas.1} parent=11 // pred_region
        _
      $region20: #{conv2d_pallas.1} parent=11 // pred_fallthru
        _
    $region12: #{conv2d_pallas.1} parent=5 // pred_fallthru
      _
    %p124 = scmp.lt.s32.totalorder %s9, 2
    // Predicated region
    $region21: #{conv2d_pallas.1} parent=5 // pred_check
      %p125 = pneg %p124
    $region22: #{conv2d_pallas.1} parent=5 // pred_check_branch
      %127 = sbr.rel (%p125) target = $region24
    $region23: #{conv2d_pallas.1} parent=5 // pred_region
      // Predicated region
      $region25: #{conv2d_pallas.1} parent=23 // pred_check
        %p128 = pneg %p29
      $region26: #{conv2d_pallas.1} parent=23 // pred_check_branch
        %130 = sbr.rel (%p128) target = $region28
      $region27: #{conv2d_pallas.1} parent=23 // pred_region
        %p131 = scmp.lt.s32.totalorder %s9, 1
        %s132 = scalar_select %p131, %s9, 1
        %s133 = smul.addr %s132, 2
        %s134 = smul.addr %s133, 4
        %s135 = scalar_lea.vmem %s0, %s134
      $region28: #{conv2d_pallas.1} parent=23 // pred_fallthru
        _
    $region24: #{conv2d_pallas.1} parent=5 // pred_fallthru
      _
    %p136 = scmp.le.s32.totalorder 1, %s9
    %p137 = scmp.lt.s32.totalorder %s9, 3
    %p138 = pnand %p136, %p137
    %p139 = pneg %p138
    // Predicated region
    $region29: #{conv2d_pallas.1} parent=5 // pred_check
      _
    $region30: #{conv2d_pallas.1} parent=5 // pred_check_branch
      %141 = sbr.rel (%p138) target = $region32
    $region31: #{conv2d_pallas.1} parent=5 // pred_region
      %s142 = ssub.s32 %s9, 1
      %p143 = scmp.lt.s32.totalorder %s14, 1
      %s144 = scalar_select %p143, %s14, 1
      %s145 = smul.addr %s144, 2
      %s146 = smul.addr %s145, 4
      %s147 = scalar_lea.vmem %s0, %s146
      %p148 = pneg %p35
      %p149 = pneg %p32
      %p150 = pneg %p56
      %p151 = pneg %p53
      %p152 = pneg %p77
      %p153 = pneg %p74
      %p154 = pneg %p103
      %p155 = pneg %p100
      %p156 = scmp.lt.s32.totalorder %s14, 1
      %s157 = scalar_select %p156, %s14, 1
      %s158 = smul.addr %s157, 2
      %s159 = smul.addr %s158, 8
      %s160 = scalar_lea.vmem %s3, %s159
      %p161 = scmp.lt.s32.totalorder %s14, 1
      %s162 = scalar_select %p161, %s14, 1
      %s163 = smul.addr %s162, 2
      %s164 = smul.addr %s163, 4
      %s165 = scalar_lea.vmem %s0, %s164
      %p166 = scmp.lt.s32.totalorder %s14, 1
      %s167 = scalar_select %p166, %s14, 1
      %s168 = smul.addr %s167, 2
      %s169 = smul.addr %s168, 8
      %s170 = scalar_lea.vmem %s3, %s169
      %v171 = vld [vmem:[%s165] sm:$0xff]
      %v173 = vcombine.high %v171, %v171
      %175 = vrot.lane.b32.xlu0 %v171, 127
      %v176 = vpop.permute.xlu0 %175
      %177 = vrot.lane.b32.xlu0 %v173, 127
      %v178 = vpop.permute.xlu0 %177
      %v179 = vlaneseq
      %v180 = vand.u32 %v179, 127
      %vm181 = vcmp.lt.s32.totalorder %v180, 127
      %v182 = vsel %vm181, %v176, %v178
      %v183 = vsel %vm181, %v178, %v176
      %184 = vrot.lane.b32.xlu0 %v171, 126
      %v185 = vpop.permute.xlu0 %184
      %186 = vrot.lane.b32.xlu0 %v173, 126
      %v187 = vpop.permute.xlu0 %186
      %vm188 = vcmp.lt.s32.totalorder %v180, 126
      %v189 = vsel %vm188, %v185, %v187
      %v190 = vsel %vm188, %v187, %v185
      %191 = vrot.lane.b32.xlu0 %v171, 112
      %v192 = vpop.permute.xlu0 %191
      %193 = vrot.lane.b32.xlu0 %v173, 112
      %v194 = vpop.permute.xlu0 %193
      %vm195 = vcmp.lt.s32.totalorder %v180, 112
      %v196 = vsel %vm195, %v192, %v194
      %v197 = vsel %vm195, %v194, %v192
      %198 = vrot.lane.b32.xlu0 %v171, 111
      %v199 = vpop.permute.xlu0 %198
      %200 = vrot.lane.b32.xlu0 %v173, 111
      %v201 = vpop.permute.xlu0 %200
      %vm202 = vcmp.lt.s32.totalorder %v180, 111
      %v203 = vsel %vm202, %v199, %v201
      %v204 = vsel %vm202, %v201, %v199
      %205 = vrot.lane.b32.xlu0 %v171, 110
      %v206 = vpop.permute.xlu0 %205
      %207 = vrot.lane.b32.xlu0 %v173, 110
      %v208 = vpop.permute.xlu0 %207
      %vm209 = vcmp.lt.s32.totalorder %v180, 110
      %v210 = vsel %vm209, %v206, %v208
      %v211 = vsel %vm209, %v208, %v206
      %212 = vrot.lane.b32.xlu0 %v171, 96
      %v213 = vpop.permute.xlu0 %212
      %214 = vrot.lane.b32.xlu0 %v173, 96
      %v215 = vpop.permute.xlu0 %214
      %vm216 = vcmp.lt.s32.totalorder %v180, 96
      %v217 = vsel %vm216, %v213, %v215
      %v218 = vsel %vm216, %v215, %v213
      %219 = vrot.lane.b32.xlu0 %v171, 95
      %v220 = vpop.permute.xlu0 %219
      %221 = vrot.lane.b32.xlu0 %v173, 95
      %v222 = vpop.permute.xlu0 %221
      %vm223 = vcmp.lt.s32.totalorder %v180, 95
      %v224 = vsel %vm223, %v220, %v222
      %v225 = vsel %vm223, %v222, %v220
      %226 = vrot.lane.b32.xlu0 %v171, 94
      %v227 = vpop.permute.xlu0 %226
      %228 = vrot.lane.b32.xlu0 %v173, 94
      %v229 = vpop.permute.xlu0 %228
      %vm230 = vcmp.lt.s32.totalorder %v180, 94
      %v231 = vsel %vm230, %v227, %v229
      %v232 = vsel %vm230, %v229, %v227
      %v235 = vrot.slane %v182, 4
      %v236 = vrot.slane %v183, 4
      %v241 = vrot.slane %v196, 4
      %v242 = vrot.slane %v197, 4
      %v247 = vrot.slane %v210, 4
      %v248 = vrot.slane %v211, 4
      %v253 = vrot.slane %v224, 4
      %v254 = vrot.slane %v225, 4
      %vm257 = vcmask 1043456
      %v258 = vsel %vm257, %v171, %v235
      %v259 = vsel %vm257, %v173, %v236
      %v260 = vsel %vm257, %v189, %v241
      %v261 = vsel %vm257, %v190, %v242
      %v262 = vsel %vm257, %v203, %v247
      %v263 = vsel %vm257, %v204, %v248
      %v264 = vsel %vm257, %v217, %v253
      %v265 = vsel %vm257, %v218, %v254
      %v266 = vld [vmem:[%s1] sm:$0xff]
      %v267 = vld [vmem:[%s2] sm:$0xff]
      %269 = vset.pattern.permute.xlu0 0
      %270 = vperm.xlu0 %269, %v267
      %v271 = vpop.permute.xlu0 %270
      %vm273 = vcmask 293888
      %v275 = vsel %vm273, %v266, 0
      %v278 = vsel %vm257, %v231, 0
      %v281 = vsel %vm257, %v232, 0
      %283 = vmatprep.subr.mxu0 %v259
      %284 = vmatpush1.msra.mxu0 %v258
      %285 = vmatprep.subr.mxu0 %v261
      %286 = vmatpush1.msra.mxu0 %v260
      %287 = vmatprep.subr.mxu0 %v263
      %288 = vmatpush1.msra.mxu0 %v262
      %289 = vmatprep.subr.mxu0 %v265
      %290 = vmatpush1.msra.mxu0 %v264
      %291 = vmatprep.subr.mxu0 %v281
      %292 = vmatpush1.msra.mxu0 %v278
      %293 = vmatprep.subr.mxu0 0.0
      %294 = vmatpush1.msra.mxu0 0.0
      %295 = vmatprep.subr.mxu0 0.0
      %296 = vmatpush1.msra.mxu0 0.0
      %297 = vmatprep.subr.mxu0 0.0
      %298 = vmatpush1.msra.mxu0 0.0
      %299 = vmatprep.subr.mxu0 0.0
      %300 = vmatpush1.msra.mxu0 0.0
      %301 = vmatprep.subr.mxu0 0.0
      %302 = vmatpush1.msra.mxu0 0.0
      %303 = vmatprep.subr.mxu0 0.0
      %304 = vmatpush1.msra.mxu0 0.0
      %305 = vmatprep.subr.mxu0 0.0
      %306 = vmatpush1.msra.mxu0 0.0
      %307 = vmatprep.subr.mxu0 0.0
      %308 = vmatpush1.msra.mxu0 0.0
      %309 = vmatprep.subr.mxu0 0.0
      %310 = vmatpush1.msra.mxu0 0.0
      %311 = vmatprep.subr.mxu0 0.0
      %312 = vmatpush1.msra.mxu0 0.0
      %313 = vmatprep.subr.mxu0 0.0
      %314 = vmatpush1.msra.mxu0 0.0
      %315 = vmatprep.subr.mxu0 0.0
      %316 = vmatpush1.msra.mxu0 0.0
      %317 = vmatprep.subr.mxu0 0.0
      %318 = vmatpush1.msra.mxu0 0.0
      %319 = vmatprep.subr.mxu0 0.0
      %320 = vmatpush1.msra.mxu0 0.0
      %321 = vmatprep.subr.mxu0 0.0
      %322 = vmatpush1.msra.mxu0 0.0
      %323 = vmatprep.subr.mxu0 0.0
      %324 = vmatpush1.msra.mxu0 0.0
      %325 = vmatprep.subr.mxu0 0.0
      %326 = vmatpush1.msra.mxu0 0.0
      %327 = vmatprep.subr.mxu0 0.0
      %328 = vmatpush1.msra.mxu0 0.0
      %329 = vmatprep.subr.mxu0 0.0
      %330 = vmatpush1.msra.mxu0 0.0
      %331 = vmatprep.subr.mxu0 0.0
      %332 = vmatpush1.msra.mxu0 0.0
      %333 = vmatprep.subr.mxu0 0.0
      %334 = vmatpush1.msra.mxu0 0.0
      %335 = vmatprep.subr.mxu0 0.0
      %336 = vmatpush1.msra.mxu0 0.0
      %337 = vmatprep.subr.mxu0 0.0
      %338 = vmatpush1.msra.mxu0 0.0
      %339 = vmatprep.subr.mxu0 0.0
      %340 = vmatpush1.msra.mxu0 0.0
      %341 = vmatprep.subr.mxu0 0.0
      %342 = vmatpush1.msra.mxu0 0.0
      %343 = vmatprep.subr.mxu0 0.0
      %344 = vmatpush1.msra.mxu0 0.0
      %345 = vmatprep.subr.mxu0 0.0
      %346 = vmatpush1.msra.mxu0 0.0
      %347 = vmatprep.mubr.f32.mxu0 0.0
      %348 = vmatmul.mubr.f32.gmra.mrb[0].mxu0 %v275
      %v349 = vpop.f32.mrb[0].mxu0
      %v350 = vadd.f32 %v271, %v349
      %v351 = vpop.f32.mrb[0].mxu0
      %v352 = vadd.f32 %v271, %v351
      %353 = vdwg.mxu0
      %354 = vst [vmem:[%s170] sm:$0xff] %v350
      %355 = vst [vmem:[%s170 + $0x8] sm:$0xff] %v352
      %p356 = scmp.lt.s32.totalorder %s14, 1
      %s357 = scalar_select %p356, %s14, 1
      %s358 = smul.addr %s357, 2
      %s359 = smul.addr %s358, 8
      %s360 = scalar_lea.vmem %s3, %s359
      // Predicated region
      $region33: #{conv2d_pallas.1} parent=31 // pred_check
        %p361 = pneg %p100
      $region34: #{conv2d_pallas.1} parent=31 // pred_check_branch
        %363 = sbr.rel (%p361) target = $region36
      $region35: #{conv2d_pallas.1} parent=31 // pred_region
        _
      $region36: #{conv2d_pallas.1} parent=31 // pred_fallthru
        _
    $region32: #{conv2d_pallas.1} parent=5 // pred_fallthru
      _
    %p364 = scmp.le.s32.totalorder 2, %s9
    // Predicated region
    $region37: #{conv2d_pallas.1} parent=5 // pred_check
      %p365 = pneg %p364
    $region38: #{conv2d_pallas.1} parent=5 // pred_check_branch
      %367 = sbr.rel (%p365) target = $region40
    $region39: #{conv2d_pallas.1} parent=5 // pred_region
      %s368 = ssub.s32 %s9, 2
      // Predicated region
      $region41: #{conv2d_pallas.1} parent=39 // pred_check
        %p369 = pneg %p106
      $region42: #{conv2d_pallas.1} parent=39 // pred_check_branch
        %371 = sbr.rel (%p369) target = $region44
      $region43: #{conv2d_pallas.1} parent=39 // pred_region
        %p372 = scmp.lt.s32.totalorder %s15, 1
        %s373 = scalar_select %p372, %s15, 1
        %s374 = smul.addr %s373, 2
        %s375 = smul.addr %s374, 8
        %s376 = scalar_lea.vmem %s3, %s375
      $region44: #{conv2d_pallas.1} parent=39 // pred_fallthru
        _
    $region40: #{conv2d_pallas.1} parent=5 // pred_fallthru
      _
  $region6: #{conv2d_pallas.1} parent=0 // loop_footer
    %s13 = sadd.s32 1, %s9
  $region7: #{conv2d_pallas.1} parent=0 // loop_footer_branch
    %8 = sbr.rel target = $region3
  $region8: #{conv2d_pallas.1} parent=0 // loop_exit
    _

</llo_original>
